<compile_context>
chip_gen: v6e
topology: v6e:2x2x1
jax: 0.10.0
libtpu: 0.0.40
codegen_flags: <defaults>
</compile_context>

<pallas_src>
import jax
import jax.numpy as jnp
from jax.experimental import pallas as pl
from jax.experimental.pallas import tpu as pltpu

BN_EPS = 1e-5
LANE = 128
MAX_TN = 512    # lane tile for head outputs (big lane-dense stores)
MAX_TM = 256    # batch tile for head outputs (bounds f32 output block in VMEM)


def _round_up(x, m):
    return ((x + m - 1) // m) * m


def _feat_tiling(nfeat):
    """Pad nfeat so the lane tile is 512 whenever nfeat >= 512."""
    nfeat_pad = _round_up(nfeat, LANE)
    if nfeat_pad >= MAX_TN:
        nfeat_pad = _round_up(nfeat, MAX_TN)
        tn = MAX_TN
    else:
        tn = nfeat_pad
    return nfeat_pad, tn


def _pad_last(a, target):
    pad = target - a.shape[-1]
    if pad == 0:
        return a
    return jnp.pad(a, [(0, 0)] * (a.ndim - 1) + [(0, pad)])


# --------------------------------------------------------------------------
# Stage 1: hidden = relu(batchnorm(emb @ w1 + b1))   (whole batch resident)
# --------------------------------------------------------------------------
def _hidden_kernel(emb_ref, w1_ref, b1_ref, gamma_ref, beta_ref, x_ref):
    h = jnp.dot(emb_ref[...], w1_ref[...],
                preferred_element_type=jnp.float32) + b1_ref[...]
    # Training-mode BatchNorm1d: batch mean / biased batch variance,
    # one-pass (E[h^2] - mu^2), clamped at 0 against rounding.
    mu = jnp.mean(h, axis=0, keepdims=True)
    var = jnp.maximum(jnp.mean(h * h, axis=0, keepdims=True) - mu * mu, 0.0)
    h = (h - mu) * jax.lax.rsqrt(var + BN_EPS) * gamma_ref[...] + beta_ref[...]
    # ReLU, then cast to bf16 for the head matmuls (f32 accumulation later).
    x_ref[...] = jnp.maximum(h, 0.0).astype(x_ref.dtype)


# --------------------------------------------------------------------------
# Stage 2: batch/feature-tiled head matmuls + per-head activation
#   grid = (batch tile, nfeat tile, head in {pi, disp, mean})
# --------------------------------------------------------------------------
def _heads_kernel(x_ref, w_ref, b_ref, out_ref):
    h = pl.program_id(2)
    z = jnp.dot(x_ref[...], w_ref[...],
                preferred_element_type=jnp.float32) + b_ref[...]

    @pl.when(h == 0)  # pi: sigmoid (exact; kernel is DMA-bound so EUP is free)
    def _():
        out_ref[...] = 1.0 / (1.0 + jnp.exp(-z))

    @pl.when(h == 1)  # disp: clamp(softplus(z), 1e-4, 1e4), stable form
    def _():
        sp = jnp.maximum(z, 0.0) + jnp.log(1.0 + jnp.exp(-jnp.abs(z)))
        out_ref[...] = jnp.clip(sp, 1e-4, 1e4)

    @pl.when(h == 2)  # mean: clamp(exp(z), 1e-5, 1e6)
    def _():
        out_ref[...] = jnp.clip(jnp.exp(z), 1e-5, 1e6)


# --------------------------------------------------------------------------
# One-time head-weight packing (NOT per forward call): stack the three head
# Linears into a single lane-padded bf16 slab + f32 bias slab.
# --------------------------------------------------------------------------
def pack_head_params(params):
    nfeat = params["w_pi"].shape[1]
    nfeat_pad, _ = _feat_tiling(nfeat)
    w_heads = jnp.stack([_pad_last(params["w_pi"], nfeat_pad),
                         _pad_last(params["w_disp"], nfeat_pad),
                         _pad_last(params["w_mean"], nfeat_pad)]
                        ).astype(jnp.bfloat16)          # [3, nhid1, nfeat_pad]
    b_heads = jnp.stack([_pad_last(params["b_pi"], nfeat_pad),
                         _pad_last(params["b_disp"], nfeat_pad),
                         _pad_last(params["b_mean"], nfeat_pad)]
                        ).astype(jnp.float32)           # [3, 1, nfeat_pad]
    return {"w_heads": w_heads, "b_heads": b_heads}


def decoder_forward(emb, params, packed, nfeat):
    """emb: [N, nhid2] float32. Returns [pi, disp, mean], each [N, nfeat]."""
    n, nhid2 = emb.shape
    nhid1 = params["w1"].shape[1]

    # ---------------- Stage 1: hidden activations (bf16) ----------------
    x = pl.pallas_call(
        _hidden_kernel,
        out_shape=jax.ShapeDtypeStruct((n, nhid1), jnp.bfloat16),
        compiler_params=pltpu.CompilerParams(
            vmem_limit_bytes=32 * 1024 * 1024),
        cost_estimate=pl.CostEstimate(
            flops=2 * n * nhid2 * nhid1 + 8 * n * nhid1,
            transcendentals=nhid1,
            bytes_accessed=4 * (n * nhid2 + nhid2 * nhid1 + 4 * nhid1)
                           + 2 * n * nhid1),
    )(emb, params["w1"], params["b1"], params["gamma"], params["beta"])

    # ---------------- Stage 2: fused heads ----------------
    w_heads = packed["w_heads"]                         # [3, nhid1, nfeat_pad]
    b_heads = packed["b_heads"]                         # [3, 1, nfeat_pad]
    nfeat_pad, tn = _feat_tiling(nfeat)
    assert w_heads.shape == (3, nhid1, nfeat_pad)

    nt = nfeat_pad // tn
    tm = n if n <= MAX_TM else MAX_TM
    mt = pl.cdiv(n, tm)

    out = pl.pallas_call(
        _heads_kernel,
        out_shape=jax.ShapeDtypeStruct((3, n, nfeat_pad), jnp.float32),
        grid_spec=pltpu.PrefetchScalarGridSpec(
            num_scalar_prefetch=0,
            # Large, even axes first so megacore (v7x) never shards the
            # size-3 head axis; head innermost keeps x resident per (m,t).
            grid=(mt, nt, 3),
            in_specs=[
                # bf16 hidden activations: re-DMA only when batch tile changes.
                pl.BlockSpec((tm, nhid1), lambda m, t, h: (m, 0)),
                # per-(head, feat-tile) weight slab, lane-dense (tn up to 512).
                pl.BlockSpec((None, nhid1, tn), lambda m, t, h: (h, 0, t)),
                # per-(head, feat-tile) bias slab.
                pl.BlockSpec((None, 1, tn), lambda m, t, h: (h, 0, t)),
            ],
            out_specs=pl.BlockSpec((None, tm, tn), lambda m, t, h: (h, m, t)),
        ),
        compiler_params=pltpu.CompilerParams(
            dimension_semantics=("parallel", "parallel", "parallel"),
            vmem_limit_bytes=32 * 1024 * 1024),
        cost_estimate=pl.CostEstimate(
            flops=2 * n * nhid1 * 3 * nfeat_pad + 6 * n * 3 * nfeat_pad,
            transcendentals=3 * n * nfeat_pad,
            bytes_accessed=2 * mt * n * nhid1 + 2 * 3 * nhid1 * nfeat_pad
                           + 4 * 3 * nfeat_pad + 4 * 3 * n * nfeat_pad),
    )(x, w_heads, b_heads)

    # TODO(synk): the :nfeat slice materializes copies when nfeat % 128 != 0;
    # fuse into the consumer (or keep nfeat lane-aligned) to avoid it.
    pi = out[0, :, :nfeat]
    disp = out[1, :, :nfeat]
    mean = out[2, :, :nfeat]
    return [pi, disp, mean]


# --------------------------------------------------------------------------
# Parameter init + pure-JAX reference (mirrors the kernel's bf16 head policy)
# --------------------------------------------------------------------------
def init_params(key, nfeat, nhid1, nhid2):
    """Deterministic synthetic init (PyTorch-like uniform fan-in scaling)."""
    ks = jax.random.split(key, 8)

    def lin(kw, kb, fan_in, fan_out):
        bound = 1.0 / jnp.sqrt(fan_in)
        w = jax.random.uniform(kw, (fan_in, fan_out), jnp.float32, -bound, bound)
        b = jax.random.uniform(kb, (1, fan_out), jnp.float32, -bound, bound)
        return w, b

    w1, b1 = lin(ks[0], ks[1], nhid2, nhid1)
    w_pi, b_pi = lin(ks[2], ks[3], nhid1, nfeat)
    w_disp, b_disp = lin(ks[4], ks[5], nhid1, nfeat)
    w_mean, b_mean = lin(ks[6], ks[7], nhid1, nfeat)

    return dict(
        w1=w1, b1=b1,
        gamma=jnp.ones((1, nhid1), jnp.float32),   # BatchNorm1d default weight
        beta=jnp.zeros((1, nhid1), jnp.float32),   # BatchNorm1d default bias
        w_pi=w_pi, b_pi=b_pi,
        w_disp=w_disp, b_disp=b_disp,
        w_mean=w_mean, b_mean=b_mean,
    )


def decoder_reference(emb, p):
    """Pure-JAX reference of the PyTorch forward (bf16 head-matmul policy)."""
    x = emb @ p["w1"] + p["b1"]
    mu = jnp.mean(x, axis=0, keepdims=True)
    var = jnp.mean((x - mu) ** 2, axis=0, keepdims=True)
    x = (x - mu) / jnp.sqrt(var + BN_EPS) * p["gamma"] + p["beta"]
    x = jnp.maximum(x, 0.0)
    xb = x.astype(jnp.bfloat16)

    def head(w, b):
        return jnp.dot(xb, w.astype(jnp.bfloat16),
                       preferred_element_type=jnp.float32) + b

    pi = jax.nn.sigmoid(head(p["w_pi"], p["b_pi"]))
    disp = jnp.clip(jax.nn.softplus(head(p["w_disp"], p["b_disp"])), 1e-4, 1e4)
    mean = jnp.clip(jnp.exp(head(p["w_mean"], p["b_mean"])), 1e-5, 1e6)
    return pi, disp, mean


if __name__ == "__main__":
    # Small shapes consistent with the module: decoder(nfeat, nhid1, nhid2)
    N, NFEAT, NHID1, NHID2 = 8, 16, 64, 32

    key = jax.random.PRNGKey(0)
    k_emb, k_par = jax.random.split(key)
    emb = jax.random.normal(k_emb, (N, NHID2), jnp.float32)
    params = init_params(k_par, NFEAT, NHID1, NHID2)

    # One-time pre-pack of the head weights (load time, NOT per forward call).
    packed = pack_head_params(params)

    pi, disp, mean = decoder_forward(emb, params, packed, NFEAT)
    jax.block_until_ready((pi, disp, mean))

    # Sanity-check against the pure-JAX reference.
    pi_r, disp_r, mean_r = decoder_reference(emb, params)
    assert pi.shape == (N, NFEAT) and disp.shape == (N, NFEAT) and mean.shape == (N, NFEAT)
    assert jnp.allclose(pi, pi_r, atol=5e-3, rtol=5e-3), "pi mismatch"
    assert jnp.allclose(disp, disp_r, atol=5e-3, rtol=5e-3), "disp mismatch"
    assert jnp.allclose(mean, mean_r, atol=1e-3, rtol=1e-2), "mean mismatch"

    print("KERNEL_OK")
</pallas_src>

<mosaic_0001>
module attributes {stable_mosaic.version = 11 : i64} {
  func.func @_hidden_kernel(%arg0: memref<8x32xf32, #tpu.memory_space<vmem>>, %arg1: memref<32x64xf32, #tpu.memory_space<vmem>>, %arg2: memref<1x64xf32, #tpu.memory_space<vmem>>, %arg3: memref<1x64xf32, #tpu.memory_space<vmem>>, %arg4: memref<1x64xf32, #tpu.memory_space<vmem>>, %arg5: memref<8x64xbf16, #tpu.memory_space<vmem>>) attributes {dimension_semantics = [], scalar_prefetch = 0 : i64, scratch_operands = 0 : i64, tpu.core_type = #tpu.core_type<tc>} {
    %c0 = arith.constant 0 : index
    %c0_0 = arith.constant 0 : index
    %0 = vector.load %arg0[%c0, %c0_0] : memref<8x32xf32, #tpu.memory_space<vmem>>, vector<8x32xf32>
    %c0_1 = arith.constant 0 : index
    %c0_2 = arith.constant 0 : index
    %1 = vector.load %arg1[%c0_1, %c0_2] : memref<32x64xf32, #tpu.memory_space<vmem>>, vector<32x64xf32>
    %cst = arith.constant dense<0.000000e+00> : vector<8x64xf32>
    %2 = tpu.matmul %0, %1, %cst {dimension_numbers = #tpu.dot_dimension_numbers<[1], [0], [0], [1], [0, 0, 1, 1], [], []>} : vector<8x32xf32>, vector<32x64xf32>, vector<8x64xf32> -> vector<8x64xf32>
    %c0_3 = arith.constant 0 : index
    %c0_4 = arith.constant 0 : index
    %3 = vector.load %arg2[%c0_3, %c0_4] : memref<1x64xf32, #tpu.memory_space<vmem>>, vector<1x64xf32>
    %4 = vector.broadcast %3 : vector<1x64xf32> to vector<8x64xf32>
    %5 = arith.addf %2, %4 : vector<8x64xf32>
    %cst_5 = arith.constant dense<0.000000e+00> : vector<64xf32>
    %6 = vector.multi_reduction <add>, %5, %cst_5 [0] : vector<8x64xf32> to vector<64xf32>
    %7 = vector.shape_cast %6 : vector<64xf32> to vector<1x64xf32>
    %cst_6 = arith.constant 8.000000e+00 : f32
    %8 = vector.broadcast %cst_6 : f32 to vector<1x64xf32>
    %9 = arith.divf %7, %8 : vector<1x64xf32>
    %10 = arith.mulf %5, %5 : vector<8x64xf32>
    %cst_7 = arith.constant dense<0.000000e+00> : vector<64xf32>
    %11 = vector.multi_reduction <add>, %10, %cst_7 [0] : vector<8x64xf32> to vector<64xf32>
    %12 = vector.shape_cast %11 : vector<64xf32> to vector<1x64xf32>
    %cst_8 = arith.constant 8.000000e+00 : f32
    %13 = vector.broadcast %cst_8 : f32 to vector<1x64xf32>
    %14 = arith.divf %12, %13 : vector<1x64xf32>
    %15 = arith.mulf %9, %9 : vector<1x64xf32>
    %16 = arith.subf %14, %15 : vector<1x64xf32>
    %cst_9 = arith.constant 0.000000e+00 : f32
    %17 = vector.broadcast %cst_9 : f32 to vector<1x64xf32>
    %18 = arith.maximumf %16, %17 : vector<1x64xf32>
    %19 = vector.broadcast %9 : vector<1x64xf32> to vector<8x64xf32>
    %20 = arith.subf %5, %19 : vector<8x64xf32>
    %cst_10 = arith.constant 9.99999974E-6 : f32
    %21 = vector.broadcast %cst_10 : f32 to vector<1x64xf32>
    %22 = arith.addf %18, %21 : vector<1x64xf32>
    %23 = math.rsqrt %22 : vector<1x64xf32>
    %24 = vector.broadcast %23 : vector<1x64xf32> to vector<8x64xf32>
    %25 = arith.mulf %20, %24 : vector<8x64xf32>
    %c0_11 = arith.constant 0 : index
    %c0_12 = arith.constant 0 : index
    %26 = vector.load %arg3[%c0_11, %c0_12] : memref<1x64xf32, #tpu.memory_space<vmem>>, vector<1x64xf32>
    %27 = vector.broadcast %26 : vector<1x64xf32> to vector<8x64xf32>
    %28 = arith.mulf %25, %27 : vector<8x64xf32>
    %c0_13 = arith.constant 0 : index
    %c0_14 = arith.constant 0 : index
    %29 = vector.load %arg4[%c0_13, %c0_14] : memref<1x64xf32, #tpu.memory_space<vmem>>, vector<1x64xf32>
    %30 = vector.broadcast %29 : vector<1x64xf32> to vector<8x64xf32>
    %31 = arith.addf %28, %30 : vector<8x64xf32>
    %cst_15 = arith.constant 0.000000e+00 : f32
    %32 = vector.broadcast %cst_15 : f32 to vector<8x64xf32>
    %33 = arith.maximumf %31, %32 : vector<8x64xf32>
    %34 = arith.truncf %33 : vector<8x64xf32> to vector<8x64xbf16>
    %c0_16 = arith.constant 0 : index
    %c0_17 = arith.constant 0 : index
    %35 = vector.load %arg5[%c0_16, %c0_17] : memref<8x64xbf16, #tpu.memory_space<vmem>>, vector<8x64xbf16>
    tpu.vector_store %arg5[%c0_16, %c0_17], %34 {strides = array<i32>} : memref<8x64xbf16, #tpu.memory_space<vmem>>, vector<8x64xbf16>,
    return
  }
}

</mosaic_0001>

<llo_original>
// kernel: tpu_custom_call.1
$region0: #{tpu_custom_call.1}
  #allocation0 [shape = 'u32[]', space=smem, size = 0x4, offset = 0x4, fixed_abs, tag = 'smem constant byte address 0x4 - core index']
  #allocation1 [shape = 'u32[144,128]{1,0:T(1,128)}', space=vmem, size = 0x12000, scoped, tag = 'internal scratch']
  %s0 = inlined_call_operand.hbm [shape: f32[8,32], index: 0, kind: input, shape index: {}]
  %s1 = inlined_call_operand.hbm [shape: f32[32,64], index: 1, kind: input, shape index: {}]
  %s2 = inlined_call_operand.vmem [shape: f32[1,64], index: 2, kind: input, shape index: {}]
  %s3 = inlined_call_operand.vmem [shape: f32[1,64], index: 3, kind: input, shape index: {}]
  %s4 = inlined_call_operand.vmem [shape: f32[1,64], index: 4, kind: input, shape index: {}]
  %s5 = inlined_call_operand.hbm [shape: bf16[8,64], index: 5, kind: output, shape index: {}]
  %s6 = sld [smem:[#allocation0]]
  $region38: #{tpu_custom_call.1} parent=0
    _
  %s8 = ssub.s32 1, %s6
  %s9 = scalar_select 0, %s8, %s6
  $region1: #{tpu_custom_call.1} parent=0
    #allocation2 [shape = 'u8[4096]{0}', space=vmem, size = 0x1000, scoped, tag = 'input window, operand 0, single buffered']
    #allocation3 [shape = 's32[1]{0}', space=sflag, size = 0x4, scoped, tag = 'scoped memory for tpu_custom_call.1']
    #allocation4 [shape = 's32[1]{0}', space=sflag, size = 0x4, scoped, tag = 'scoped memory for tpu_custom_call.1']
    #allocation5 [shape = 'u8[16384]{0}', space=vmem, size = 0x4000, scoped, tag = 'input window, operand 1, single buffered']
    #allocation6 [shape = 's32[1]{0}', space=sflag, size = 0x4, scoped, tag = 'scoped memory for tpu_custom_call.1']
    #allocation7 [shape = 'u8[2048]{0}', space=vmem, size = 0x800, scoped, tag = 'output window, operand 0, single buffered']
    %10 = vsyncpa [#allocation3], 0
    %11 = vsyncpa [#allocation6], 0
    %12 = vsyncpa [#allocation4], 0
    // Predicated region
    $region2: #{tpu_custom_call.1} parent=1 // pred_check
      _
    $region3: #{tpu_custom_call.1} parent=1 // pred_check_branch
      %14 = sbr.rel (0) target = $region5
    $region4: #{tpu_custom_call.1} parent=1 // pred_region
      %s16 = ssub.s32 128, 128
      %17 = vsyncadd [#allocation3], %s16
      %s19 = sshll.u32 [#allocation2], 4
      %s20 = int_to_ptr.vmem [resolvable:$true] %s19
      %22 = dma.hbm_to_vmem [thread:$0]  %s0, 128, %s20, [#allocation3]
    $region5: #{tpu_custom_call.1} parent=1 // pred_fallthru
      _
    // Predicated region
    $region6: #{tpu_custom_call.1} parent=1 // pred_check
      _
    $region7: #{tpu_custom_call.1} parent=1 // pred_check_branch
      %24 = sbr.rel (0) target = $region9
    $region8: #{tpu_custom_call.1} parent=1 // pred_region
      %s26 = ssub.s32 512, 512
      %27 = vsyncadd [#allocation6], %s26
      %s28 = sshll.u32 [#allocation5], 4
      %s29 = int_to_ptr.vmem [resolvable:$true] %s28
      %34 = dma.hbm_to_vmem [thread:$0]  %s1, 512, %s29, [#allocation6], 128, 128, 8
    $region9: #{tpu_custom_call.1} parent=1 // pred_fallthru
      _
    // Predicated region
    $region10: #{tpu_custom_call.1} parent=1 // pred_check
      _
    $region11: #{tpu_custom_call.1} parent=1 // pred_check_branch
      %36 = sbr.rel (0) target = $region13
    $region12: #{tpu_custom_call.1} parent=1 // pred_region
      _
    $region13: #{tpu_custom_call.1} parent=1 // pred_fallthru
      _
    // Predicated region
    $region14: #{tpu_custom_call.1} parent=1 // pred_check
      _
    $region15: #{tpu_custom_call.1} parent=1 // pred_check_branch
      %38 = sbr.rel (0) target = $region17
    $region16: #{tpu_custom_call.1} parent=1 // pred_region
      _
    $region17: #{tpu_custom_call.1} parent=1 // pred_fallthru
      _
    // Predicated region
    $region18: #{tpu_custom_call.1} parent=1 // pred_check
      _
    $region19: #{tpu_custom_call.1} parent=1 // pred_check_branch
      %40 = sbr.rel (0) target = $region21
    $region20: #{tpu_custom_call.1} parent=1 // pred_region
      _
    $region21: #{tpu_custom_call.1} parent=1 // pred_fallthru
      _
    // Predicated region
    $region22: #{tpu_custom_call.1} parent=1 // pred_check
      _
    $region23: #{tpu_custom_call.1} parent=1 // pred_check_branch
      %42 = sbr.rel (0) target = $region25
    $region24: #{tpu_custom_call.1} parent=1 // pred_region
      %43 = dma.done [#allocation3], 128
    $region25: #{tpu_custom_call.1} parent=1 // pred_fallthru
      _
    // Predicated region
    $region26: #{tpu_custom_call.1} parent=1 // pred_check
      _
    $region27: #{tpu_custom_call.1} parent=1 // pred_check_branch
      %45 = sbr.rel (0) target = $region29
    $region28: #{tpu_custom_call.1} parent=1 // pred_region
      %46 = dma.done [#allocation6], 512
    $region29: #{tpu_custom_call.1} parent=1 // pred_fallthru
      _
    %v47 = vld [vmem:[#allocation2] sm:$0xff]
    %v48 = vld [vmem:[#allocation5] sm:$0xff]
    %v49 = vld [vmem:[#allocation5 + $0x8] sm:$0xff]
    %v50 = vld [vmem:[#allocation5 + $0x10] sm:$0xff]
    %v51 = vld [vmem:[#allocation5 + $0x18] sm:$0xff]
    %v52 = vld [vmem:[%s2] sm:$0x1]
    %v54 = vlaneseq
    %v55 = vshrl.u32 %v54, 7
    %v56 = vsub.s32 0, %v55
    %v57 = vrot.slane %v52, %v56
    %vm59 = vcmask 261120
    %v61 = vsel %vm59, %v47, 0
    %63 = vmatprep.subr.mxu0 0.0
    %64 = vmatpush1.msra.mxu0 0.0
    %65 = vmatprep.subr.mxu0 0.0
    %66 = vmatpush1.msra.mxu0 0.0
    %67 = vmatprep.subr.mxu0 0.0
    %68 = vmatpush1.msra.mxu0 0.0
    %69 = vmatprep.subr.mxu0 0.0
    %70 = vmatpush1.msra.mxu0 0.0
    %71 = vmatprep.subr.mxu0 0.0
    %72 = vmatpush1.msra.mxu0 0.0
    %73 = vmatprep.subr.mxu0 0.0
    %74 = vmatpush1.msra.mxu0 0.0
    %75 = vmatprep.subr.mxu0 0.0
    %76 = vmatpush1.msra.mxu0 0.0
    %77 = vmatprep.subr.mxu0 0.0
    %78 = vmatpush1.msra.mxu0 0.0
    %79 = vmatprep.subr.mxu0 0.0
    %80 = vmatpush1.msra.mxu0 0.0
    %81 = vmatprep.subr.mxu0 0.0
    %82 = vmatpush1.msra.mxu0 0.0
    %83 = vmatprep.subr.mxu0 0.0
    %84 = vmatpush1.msra.mxu0 0.0
    %85 = vmatprep.subr.mxu0 0.0
    %86 = vmatpush1.msra.mxu0 0.0
    %87 = vmatprep.subr.mxu0 0.0
    %88 = vmatpush1.msra.mxu0 %v51
    %89 = vmatprep.subr.mxu0 0.0
    %90 = vmatpush1.msra.mxu0 %v50
    %91 = vmatprep.subr.mxu0 0.0
    %92 = vmatpush1.msra.mxu0 %v49
    %93 = vmatprep.subr.mxu0 0.0
    %94 = vmatpush1.msra.mxu0 %v48
    %95 = vmatprep.subr.mxu0 0.0
    %96 = vmatpush2.msra.mxu0 0.0
    %97 = vmatprep.subr.mxu0 0.0
    %98 = vmatpush2.msra.mxu0 0.0
    %99 = vmatprep.subr.mxu0 0.0
    %100 = vmatpush2.msra.mxu0 0.0
    %101 = vmatprep.subr.mxu0 0.0
    %102 = vmatpush2.msra.mxu0 0.0
    %103 = vmatprep.subr.mxu0 0.0
    %104 = vmatpush2.msra.mxu0 0.0
    %105 = vmatprep.subr.mxu0 0.0
    %106 = vmatpush2.msra.mxu0 0.0
    %107 = vmatprep.subr.mxu0 0.0
    %108 = vmatpush2.msra.mxu0 0.0
    %109 = vmatprep.subr.mxu0 0.0
    %110 = vmatpush2.msra.mxu0 0.0
    %111 = vmatprep.subr.mxu0 0.0
    %112 = vmatpush2.msra.mxu0 0.0
    %113 = vmatprep.subr.mxu0 0.0
    %114 = vmatpush2.msra.mxu0 0.0
    %115 = vmatprep.subr.mxu0 0.0
    %116 = vmatpush2.msra.mxu0 0.0
    %117 = vmatprep.subr.mxu0 0.0
    %118 = vmatpush2.msra.mxu0 0.0
    %119 = vmatprep.subr.mxu0 0.0
    %120 = vmatpush2.msra.mxu0 0.0
    %121 = vmatprep.subr.mxu0 0.0
    %122 = vmatpush2.msra.mxu0 0.0
    %123 = vmatprep.subr.mxu0 0.0
    %124 = vmatpush2.msra.mxu0 0.0
    %125 = vmatprep.subr.mxu0 0.0
    %126 = vmatpush2.msra.mxu0 0.0
    %127 = vmatprep.mubr.f32.mxu0 0.0
    %128 = vmatmul.mubr.f32.gmra.mxu0 %v61
    %v129 = vpop.f32.mrf.mxu0
    %v130 = vadd.f32 %v57, %v129
    %v131 = vpop.f32.mrf.mxu0
    %132 = vdwg.mxu0
    %vm133 = vcmask 523264
    %v134 = vsel %vm133, %v130, 0.0
    %v135 = vrot.slane %v134, 4
    %v136 = vadd.f32 %v134, %v135
    %v137 = vrot.slane %v136, 2
    %v138 = vadd.f32 %v136, %v137
    %v139 = vrot.slane %v138, 1
    %v140 = vadd.f32 %v138, %v139
    %v141 = vrcp.pop 8.0
    %v142 = vmul.f32 %v140, %v141
    %v143 = vmul.f32 %v130, %v130
    %v144 = vsel %vm133, %v143, 0.0
    %v145 = vrot.slane %v144, 4
    %v146 = vadd.f32 %v144, %v145
    %v147 = vrot.slane %v146, 2
    %v148 = vadd.f32 %v146, %v147
    %v149 = vrot.slane %v148, 1
    %v150 = vadd.f32 %v148, %v149
    %v151 = vmul.f32 %v150, %v141
    %v152 = vmul.f32 %v142, %v142
    %v153 = vsub.f32 %v151, %v152
    %v154 = vmax.f32 %v153, 0.0
    %v155 = vsub.f32 %v130, %v142
    %v156 = vadd.f32 %v154, 1e-05
    %v157 = vrsqrt.pop %v156
    %v158 = vmul.f32 %v155, %v157
    %v159 = vld [vmem:[%s3] sm:$0x1]
    %v161 = vlaneseq
    %v162 = vshrl.u32 %v161, 7
    %v163 = vsub.s32 0, %v162
    %v164 = vrot.slane %v159, %v163
    %v166 = vmul.f32 %v158, %v164
    %v167 = vld [vmem:[%s4] sm:$0x1]
    %v169 = vlaneseq
    %v170 = vshrl.u32 %v169, 7
    %v171 = vsub.s32 0, %v170
    %v172 = vrot.slane %v167, %v171
    %v174 = vadd.f32 %v166, %v172
    %v175 = vmax.f32 %v174, 0.0
    %v176 = vpack.c.bf16 %v175, %v175
    %vm177 = vcmask 519168
    %178 = vst.msk [vmem:[#allocation7] sm:$0xf] %vm177, %v176
    // Predicated region
    $region30: #{tpu_custom_call.1} parent=1 // pred_check
      _
    $region31: #{tpu_custom_call.1} parent=1 // pred_check_branch
      %180 = sbr.rel (0) target = $region33
    $region32: #{tpu_custom_call.1} parent=1 // pred_region
      %s182 = ssub.s32 64, 64
      %183 = vsyncadd [#allocation4], %s182
      %s185 = sshll.u32 [#allocation7], 4
      %s186 = int_to_ptr.vmem [resolvable:$true] %s185
      %188 = dma.vmem_to_hbm [thread:$0]  %s186, 64, %s5, [#allocation4]
    $region33: #{tpu_custom_call.1} parent=1 // pred_fallthru
      _
    // Predicated region
    $region34: #{tpu_custom_call.1} parent=1 // pred_check
      _
    $region35: #{tpu_custom_call.1} parent=1 // pred_check_branch
      %190 = sbr.rel (0) target = $region37
    $region36: #{tpu_custom_call.1} parent=1 // pred_region
      %191 = dma.done [#allocation4], 64
    $region37: #{tpu_custom_call.1} parent=1 // pred_fallthru
      _
    %192 = vsyncpa [#allocation3], 1
    %193 = vsyncpa [#allocation6], 1
    %194 = vsyncpa [#allocation4], 1

</llo_original>
